<compile_context>
chip_gen: v5e
topology: v5e:2x2
jax: 0.10.0
libtpu: 0.0.40
codegen_flags: <defaults>
</compile_context>

<pallas_src>
import math

import jax
import jax.numpy as jnp
from jax.experimental import pallas as pl
from jax.experimental.pallas import tpu as pltpu

LN_EPS = 1e-5      # PyTorch nn.LayerNorm default eps


def _cdiv(a, b):
    return -(-a // b)


def _round_up(a, m):
    return _cdiv(a, m) * m


def _layernorm(h, gamma, beta):
    mu = jnp.mean(h, axis=-1, keepdims=True)
    var = jnp.mean(jnp.square(h - mu), axis=-1, keepdims=True)
    return (h - mu) * jax.lax.rsqrt(var + LN_EPS) * gamma + beta


def critic_kernel(
    xa_ref,     # [TILE_B, D + A]   state columns then action columns
    w1_ref,     # [D, H]
    w2_ref,     # [H + A, H]        hidden rows then action rows
    vec_ref,    # [8, H]  rows: b1, g1, be1, b2, g2, be2, w3_row, b3_row
    o_ref,      # [8, TILE_B]       batch on lanes, Q broadcast over sublanes
):
    D = w1_ref.shape[0]
    H = w1_ref.shape[1]
    A = w2_ref.shape[0] - H

    xa = xa_ref[...]
    x = xa[:, :D]

    b1 = vec_ref[0:1, :]
    g1 = vec_ref[1:2, :]
    be1 = vec_ref[2:3, :]
    b2 = vec_ref[3:4, :]
    g2 = vec_ref[4:5, :]
    be2 = vec_ref[5:6, :]
    w3 = vec_ref[6:7, :]        # [1, H] head weight row
    b3 = vec_ref[7:8, 0:1]      # [1, 1] head bias

    # ---- linear1 + layerNorm + relu ----
    h = jnp.dot(x, w1_ref[...], preferred_element_type=jnp.float32) + b1
    h = jnp.maximum(_layernorm(h, g1, be1), 0.0)

    # ---- cat((h, a), 1) @ W2 + b2 : hidden part on the MXU, action part as
    #      A rank-1 VPU updates (skips a second K=A MXU push/pop) ----
    h2 = jnp.dot(h, w2_ref[0:H, :], preferred_element_type=jnp.float32) + b2
    w2a = w2_ref[H:, :]                                   # [A, H]
    for k in range(A):
        h2 = h2 + xa[:, D + k:D + k + 1] * w2a[k:k + 1, :]
    h2 = jnp.maximum(_layernorm(h2, g2, be2), 0.0)

    # ---- head: batch lands on the lane axis -> dense [8, TILE_B] block ----
    w3_rows = jnp.broadcast_to(w3, (8, H))                # sublane broadcast
    q = jax.lax.dot_general(
        w3_rows, h2,
        dimension_numbers=(((1,), (1,)), ((), ())),       # contract H with H
        preferred_element_type=jnp.float32,
    )                                                     # [8, TILE_B]
    o_ref[...] = (q + b3).astype(o_ref.dtype)


def critic_forward(x, actions, params, *, tile_b=512):
    """Q(x, a) -> [B, 1]."""
    B, D = x.shape
    A = actions.shape[1]
    w1, w2, vecs = params["w1"], params["w2"], params["vecs"]
    H = w1.shape[1]

    xa = jnp.concatenate([x, actions], axis=1)            # one input operand

    if B <= tile_b:
        tile_b = B                                        # single full block
        num_tiles = 1
    else:
        num_tiles = _cdiv(B, tile_b)
        if num_tiles % 2:          # even tile count: balances v7x's 2 TCs
            num_tiles += 1
        tile_b = _round_up(_cdiv(B, num_tiles), 128)      # lane-dense output
        num_tiles = _cdiv(B, tile_b)
        if num_tiles > 1 and num_tiles % 2:
            num_tiles += 1
    b_pad = num_tiles * tile_b
    if b_pad != B:
        xa = jnp.pad(xa, ((0, b_pad - B), (0, 0)))

    flops = 2 * b_pad * (D * H + (H + A) * H + 8 * H)
    bytes_accessed = 4 * (
        b_pad * (D + A)                    # inputs, read once
        + D * H + (H + A) * H + 8 * H      # resident weights, counted once
        + num_tiles * 8 * tile_b           # output writeback
    )

    grid_spec = pltpu.PrefetchScalarGridSpec(
        num_scalar_prefetch=0,
        grid=(num_tiles,),
        in_specs=[
            pl.BlockSpec((tile_b, D + A), lambda i: (i, 0)),
            pl.BlockSpec((D, H), lambda i: (0, 0)),        # weights resident
            pl.BlockSpec((H + A, H), lambda i: (0, 0)),
            pl.BlockSpec((8, H), lambda i: (0, 0)),
        ],
        out_specs=pl.BlockSpec((8, tile_b), lambda i: (i, 0)),
    )

    out_slab = pl.pallas_call(
        critic_kernel,
        out_shape=jax.ShapeDtypeStruct((num_tiles * 8, tile_b), jnp.float32),
        grid_spec=grid_spec,
        compiler_params=pltpu.CompilerParams(
            dimension_semantics=("parallel",),
        ),
        cost_estimate=pl.CostEstimate(
            flops=flops,
            transcendentals=2 * b_pad,       # two rsqrt per row (layernorms)
            bytes_accessed=bytes_accessed,
        ),
    )(xa, w1, w2, vecs)

    # Row 0 of each [8, tile_b] block carries the Q values (batch on lanes).
    q = out_slab.reshape(num_tiles, 8, tile_b)[:, 0, :].reshape(b_pad)
    return q[:B, None]


def init_critic_params(key, input_size, hidden_size, action_dim):
    """Deterministic init mirroring the PyTorch module's __init__."""
    ks = jax.random.split(key, 6)
    # The module uses 1/sqrt(inputSize) for BOTH linear1 and linear2 (as written).
    bound1 = 1.0 / math.sqrt(input_size)

    # linear1: torch weight [H, D] -> store transposed [D, H]
    w1_t = jax.random.uniform(ks[0], (hidden_size, input_size), minval=-bound1, maxval=bound1)
    b1 = jax.random.uniform(ks[1], (hidden_size,), minval=-bound1, maxval=bound1)

    # linear2: torch weight [H, H + A] -> store transposed [H + A, H]
    w2_t = jax.random.uniform(
        ks[2], (hidden_size, hidden_size + action_dim), minval=-bound1, maxval=bound1
    )
    b2 = jax.random.uniform(ks[3], (hidden_size,), minval=-bound1, maxval=bound1)

    # acts: torch weight [1, H], uniform(-0.003, 0.003)
    w3_t = jax.random.uniform(ks[4], (1, hidden_size), minval=-0.003, maxval=0.003)
    b3 = jax.random.uniform(ks[5], (1,), minval=-0.003, maxval=0.003)

    ones = jnp.ones((hidden_size,), jnp.float32)
    zeros = jnp.zeros((hidden_size,), jnp.float32)
    vecs = jnp.stack(
        [
            b1, ones, zeros,                       # b1, gamma1, beta1
            b2, ones, zeros,                       # b2, gamma2, beta2
            w3_t[0],                               # head weight row [H]
            jnp.full((hidden_size,), b3[0]),       # head bias (broadcast row)
        ],
        axis=0,
    ).astype(jnp.float32)                          # [8, H]

    return {
        "w1": w1_t.T.astype(jnp.float32),          # [D, H]
        "w2": w2_t.T.astype(jnp.float32),          # [H + A, H]
        "vecs": vecs,                              # [8, H]
    }


def critic_reference(x, actions, p):
    """Pure-JAX reference for verification."""
    v = p["vecs"]
    b1, g1, be1, b2, g2, be2, w3, b3row = (v[i] for i in range(8))
    b3 = b3row[0]

    def ln(h, g, b):
        mu = jnp.mean(h, -1, keepdims=True)
        var = jnp.mean((h - mu) ** 2, -1, keepdims=True)
        return (h - mu) / jnp.sqrt(var + LN_EPS) * g + b

    h = jnp.maximum(ln(x @ p["w1"] + b1, g1, be1), 0.0)
    cat = jnp.concatenate([h, actions], axis=1)
    h2 = jnp.maximum(ln(cat @ p["w2"] + b2, g2, be2), 0.0)
    return h2 @ w3[:, None] + b3


if __name__ == "__main__":
    INPUT = 16      # inputSize (state dim)
    HIDDEN = 32     # hiddenLayerSize
    ACTION = 4      # actionSpace.shape[0]

    key = jax.random.PRNGKey(0)
    k_params, k_x, k_a = jax.random.split(key, 3)
    params = init_critic_params(k_params, INPUT, HIDDEN, ACTION)

    # B=2 exercises the single-block path; B=600 exercises the padded batch
    # grid (2 even tiles of 384 rows, weights resident, batch-on-lanes output).
    for B in (2, 600):
        kx = jax.random.fold_in(k_x, B)
        ka = jax.random.fold_in(k_a, B)
        x = jax.random.normal(kx, (B, INPUT), dtype=jnp.float32)
        actions = jax.random.uniform(ka, (B, ACTION), minval=-1.0, maxval=1.0, dtype=jnp.float32)

        out = jax.block_until_ready(critic_forward(x, actions, params))
        ref = critic_reference(x, actions, params)

        assert out.shape == (B, 1), out.shape
        assert jnp.allclose(out, ref, atol=1e-5, rtol=1e-4), (B, out[:4], ref[:4])

    print("KERNEL_OK")
</pallas_src>

<mosaic_0001>
module attributes {stable_mosaic.version = 11 : i64} {
  func.func @critic_kernel(%arg0: i32, %arg1: memref<2x20xf32, #tpu.memory_space<vmem>>, %arg2: memref<16x32xf32, #tpu.memory_space<vmem>>, %arg3: memref<36x32xf32, #tpu.memory_space<vmem>>, %arg4: memref<8x32xf32, #tpu.memory_space<vmem>>, %arg5: memref<8x2xf32, #tpu.memory_space<vmem>>) attributes {dimension_semantics = [#tpu.dimension_semantics<parallel>], iteration_bounds = array<i64: 1>, scalar_prefetch = 0 : i64, scratch_operands = 0 : i64, tpu.core_type = #tpu.core_type<tc>, window_params = [{transform_indices = @transform_0, window_bounds = array<i64: 2, 20>}, {pipeline_mode = #tpu.pipeline_mode<synchronous>, transform_indices = @transform_1, window_bounds = array<i64: 16, 32>}, {pipeline_mode = #tpu.pipeline_mode<synchronous>, transform_indices = @transform_2, window_bounds = array<i64: 36, 32>}, {pipeline_mode = #tpu.pipeline_mode<synchronous>, transform_indices = @transform_3, window_bounds = array<i64: 8, 32>}, {transform_indices = @transform_4, window_bounds = array<i64: 8, 2>}]} {
    %c0 = arith.constant 0 : index
    %c0_0 = arith.constant 0 : index
    %0 = vector.load %arg1[%c0, %c0_0] : memref<2x20xf32, #tpu.memory_space<vmem>>, vector<2x20xf32>
    %1 = vector.extract_strided_slice %0 {offsets = [0, 0], sizes = [2, 16], strides = [1, 1]} : vector<2x20xf32> to vector<2x16xf32>
    %c0_1 = arith.constant 0 : index
    %c0_2 = arith.constant 0 : index
    %2 = vector.load %arg4[%c0_1, %c0_2] : memref<8x32xf32, #tpu.memory_space<vmem>>, vector<1x32xf32>
    %c1 = arith.constant 1 : index
    %c0_3 = arith.constant 0 : index
    %3 = vector.load %arg4[%c1, %c0_3] : memref<8x32xf32, #tpu.memory_space<vmem>>, vector<1x32xf32>
    %c2 = arith.constant 2 : index
    %c0_4 = arith.constant 0 : index
    %4 = vector.load %arg4[%c2, %c0_4] : memref<8x32xf32, #tpu.memory_space<vmem>>, vector<1x32xf32>
    %c3 = arith.constant 3 : index
    %c0_5 = arith.constant 0 : index
    %5 = vector.load %arg4[%c3, %c0_5] : memref<8x32xf32, #tpu.memory_space<vmem>>, vector<1x32xf32>
    %c4 = arith.constant 4 : index
    %c0_6 = arith.constant 0 : index
    %6 = vector.load %arg4[%c4, %c0_6] : memref<8x32xf32, #tpu.memory_space<vmem>>, vector<1x32xf32>
    %c5 = arith.constant 5 : index
    %c0_7 = arith.constant 0 : index
    %7 = vector.load %arg4[%c5, %c0_7] : memref<8x32xf32, #tpu.memory_space<vmem>>, vector<1x32xf32>
    %c6 = arith.constant 6 : index
    %c0_8 = arith.constant 0 : index
    %8 = vector.load %arg4[%c6, %c0_8] : memref<8x32xf32, #tpu.memory_space<vmem>>, vector<1x32xf32>
    %c7 = arith.constant 7 : index
    %c0_9 = arith.constant 0 : index
    %9 = vector.load %arg4[%c7, %c0_9] : memref<8x32xf32, #tpu.memory_space<vmem>>, vector<1x1xf32>
    %c0_10 = arith.constant 0 : index
    %c0_11 = arith.constant 0 : index
    %10 = vector.load %arg2[%c0_10, %c0_11] : memref<16x32xf32, #tpu.memory_space<vmem>>, vector<16x32xf32>
    %cst = arith.constant dense<0.000000e+00> : vector<2x32xf32>
    %11 = tpu.matmul %1, %10, %cst {dimension_numbers = #tpu.dot_dimension_numbers<[1], [0], [0], [1], [0, 0, 1, 1], [], []>} : vector<2x16xf32>, vector<16x32xf32>, vector<2x32xf32> -> vector<2x32xf32>
    %12 = vector.broadcast %2 : vector<1x32xf32> to vector<2x32xf32>
    %13 = arith.addf %11, %12 : vector<2x32xf32>
    %cst_12 = arith.constant dense<0.000000e+00> : vector<2xf32>
    %14 = vector.multi_reduction <add>, %13, %cst_12 [1] : vector<2x32xf32> to vector<2xf32>
    %15 = vector.shape_cast %14 : vector<2xf32> to vector<2x1xf32>
    %cst_13 = arith.constant 3.200000e+01 : f32
    %16 = vector.broadcast %cst_13 : f32 to vector<2x1xf32>
    %17 = arith.divf %15, %16 : vector<2x1xf32>
    %18 = vector.broadcast %17 : vector<2x1xf32> to vector<2x32xf32>
    %19 = arith.subf %13, %18 : vector<2x32xf32>
    %20 = arith.mulf %19, %19 : vector<2x32xf32>
    %cst_14 = arith.constant dense<0.000000e+00> : vector<2xf32>
    %21 = vector.multi_reduction <add>, %20, %cst_14 [1] : vector<2x32xf32> to vector<2xf32>
    %22 = vector.shape_cast %21 : vector<2xf32> to vector<2x1xf32>
    %cst_15 = arith.constant 3.200000e+01 : f32
    %23 = vector.broadcast %cst_15 : f32 to vector<2x1xf32>
    %24 = arith.divf %22, %23 : vector<2x1xf32>
    %25 = vector.broadcast %17 : vector<2x1xf32> to vector<2x32xf32>
    %26 = arith.subf %13, %25 : vector<2x32xf32>
    %cst_16 = arith.constant 9.99999974E-6 : f32
    %27 = vector.broadcast %cst_16 : f32 to vector<2x1xf32>
    %28 = arith.addf %24, %27 : vector<2x1xf32>
    %29 = math.rsqrt %28 : vector<2x1xf32>
    %30 = vector.broadcast %29 : vector<2x1xf32> to vector<2x32xf32>
    %31 = arith.mulf %26, %30 : vector<2x32xf32>
    %32 = vector.broadcast %3 : vector<1x32xf32> to vector<2x32xf32>
    %33 = arith.mulf %31, %32 : vector<2x32xf32>
    %34 = vector.broadcast %4 : vector<1x32xf32> to vector<2x32xf32>
    %35 = arith.addf %33, %34 : vector<2x32xf32>
    %cst_17 = arith.constant 0.000000e+00 : f32
    %36 = vector.broadcast %cst_17 : f32 to vector<2x32xf32>
    %37 = arith.maximumf %35, %36 : vector<2x32xf32>
    %c0_18 = arith.constant 0 : index
    %c0_19 = arith.constant 0 : index
    %38 = vector.load %arg3[%c0_18, %c0_19] : memref<36x32xf32, #tpu.memory_space<vmem>>, vector<32x32xf32>
    %cst_20 = arith.constant dense<0.000000e+00> : vector<2x32xf32>
    %39 = tpu.matmul %37, %38, %cst_20 {dimension_numbers = #tpu.dot_dimension_numbers<[1], [0], [0], [1], [0, 0, 1, 1], [], []>} : vector<2x32xf32>, vector<32x32xf32>, vector<2x32xf32> -> vector<2x32xf32>
    %40 = vector.broadcast %5 : vector<1x32xf32> to vector<2x32xf32>
    %41 = arith.addf %39, %40 : vector<2x32xf32>
    %c32 = arith.constant 32 : index
    %c0_21 = arith.constant 0 : index
    %42 = vector.load %arg3[%c32, %c0_21] : memref<36x32xf32, #tpu.memory_space<vmem>>, vector<4x32xf32>
    %43 = vector.extract_strided_slice %0 {offsets = [0, 16], sizes = [2, 1], strides = [1, 1]} : vector<2x20xf32> to vector<2x1xf32>
    %44 = vector.extract_strided_slice %42 {offsets = [0, 0], sizes = [1, 32], strides = [1, 1]} : vector<4x32xf32> to vector<1x32xf32>
    %45 = vector.broadcast %43 : vector<2x1xf32> to vector<2x32xf32>
    %46 = vector.broadcast %44 : vector<1x32xf32> to vector<2x32xf32>
    %47 = arith.mulf %45, %46 : vector<2x32xf32>
    %48 = arith.addf %41, %47 : vector<2x32xf32>
    %49 = vector.extract_strided_slice %0 {offsets = [0, 17], sizes = [2, 1], strides = [1, 1]} : vector<2x20xf32> to vector<2x1xf32>
    %50 = vector.extract_strided_slice %42 {offsets = [1, 0], sizes = [1, 32], strides = [1, 1]} : vector<4x32xf32> to vector<1x32xf32>
    %51 = vector.broadcast %49 : vector<2x1xf32> to vector<2x32xf32>
    %52 = vector.broadcast %50 : vector<1x32xf32> to vector<2x32xf32>
    %53 = arith.mulf %51, %52 : vector<2x32xf32>
    %54 = arith.addf %48, %53 : vector<2x32xf32>
    %55 = vector.extract_strided_slice %0 {offsets = [0, 18], sizes = [2, 1], strides = [1, 1]} : vector<2x20xf32> to vector<2x1xf32>
    %56 = vector.extract_strided_slice %42 {offsets = [2, 0], sizes = [1, 32], strides = [1, 1]} : vector<4x32xf32> to vector<1x32xf32>
    %57 = vector.broadcast %55 : vector<2x1xf32> to vector<2x32xf32>
    %58 = vector.broadcast %56 : vector<1x32xf32> to vector<2x32xf32>
    %59 = arith.mulf %57, %58 : vector<2x32xf32>
    %60 = arith.addf %54, %59 : vector<2x32xf32>
    %61 = vector.extract_strided_slice %0 {offsets = [0, 19], sizes = [2, 1], strides = [1, 1]} : vector<2x20xf32> to vector<2x1xf32>
    %62 = vector.extract_strided_slice %42 {offsets = [3, 0], sizes = [1, 32], strides = [1, 1]} : vector<4x32xf32> to vector<1x32xf32>
    %63 = vector.broadcast %61 : vector<2x1xf32> to vector<2x32xf32>
    %64 = vector.broadcast %62 : vector<1x32xf32> to vector<2x32xf32>
    %65 = arith.mulf %63, %64 : vector<2x32xf32>
    %66 = arith.addf %60, %65 : vector<2x32xf32>
    %cst_22 = arith.constant dense<0.000000e+00> : vector<2xf32>
    %67 = vector.multi_reduction <add>, %66, %cst_22 [1] : vector<2x32xf32> to vector<2xf32>
    %68 = vector.shape_cast %67 : vector<2xf32> to vector<2x1xf32>
    %cst_23 = arith.constant 3.200000e+01 : f32
    %69 = vector.broadcast %cst_23 : f32 to vector<2x1xf32>
    %70 = arith.divf %68, %69 : vector<2x1xf32>
    %71 = vector.broadcast %70 : vector<2x1xf32> to vector<2x32xf32>
    %72 = arith.subf %66, %71 : vector<2x32xf32>
    %73 = arith.mulf %72, %72 : vector<2x32xf32>
    %cst_24 = arith.constant dense<0.000000e+00> : vector<2xf32>
    %74 = vector.multi_reduction <add>, %73, %cst_24 [1] : vector<2x32xf32> to vector<2xf32>
    %75 = vector.shape_cast %74 : vector<2xf32> to vector<2x1xf32>
    %cst_25 = arith.constant 3.200000e+01 : f32
    %76 = vector.broadcast %cst_25 : f32 to vector<2x1xf32>
    %77 = arith.divf %75, %76 : vector<2x1xf32>
    %78 = vector.broadcast %70 : vector<2x1xf32> to vector<2x32xf32>
    %79 = arith.subf %66, %78 : vector<2x32xf32>
    %cst_26 = arith.constant 9.99999974E-6 : f32
    %80 = vector.broadcast %cst_26 : f32 to vector<2x1xf32>
    %81 = arith.addf %77, %80 : vector<2x1xf32>
    %82 = math.rsqrt %81 : vector<2x1xf32>
    %83 = vector.broadcast %82 : vector<2x1xf32> to vector<2x32xf32>
    %84 = arith.mulf %79, %83 : vector<2x32xf32>
    %85 = vector.broadcast %6 : vector<1x32xf32> to vector<2x32xf32>
    %86 = arith.mulf %84, %85 : vector<2x32xf32>
    %87 = vector.broadcast %7 : vector<1x32xf32> to vector<2x32xf32>
    %88 = arith.addf %86, %87 : vector<2x32xf32>
    %cst_27 = arith.constant 0.000000e+00 : f32
    %89 = vector.broadcast %cst_27 : f32 to vector<2x32xf32>
    %90 = arith.maximumf %88, %89 : vector<2x32xf32>
    %91 = vector.shape_cast %8 : vector<1x32xf32> to vector<1x32xf32>
    %92 = vector.broadcast %91 : vector<1x32xf32> to vector<8x32xf32>
    %cst_28 = arith.constant dense<0.000000e+00> : vector<8x2xf32>
    %93 = tpu.matmul %92, %90, %cst_28 {dimension_numbers = #tpu.dot_dimension_numbers<[1], [1], [0], [0], [0, 0, 1, 0], [], []>} : vector<8x32xf32>, vector<2x32xf32>, vector<8x2xf32> -> vector<8x2xf32>
    %94 = vector.broadcast %9 : vector<1x1xf32> to vector<8x2xf32>
    %95 = arith.addf %93, %94 : vector<8x2xf32>
    %c0_29 = arith.constant 0 : index
    %c0_30 = arith.constant 0 : index
    %96 = vector.load %arg5[%c0_29, %c0_30] : memref<8x2xf32, #tpu.memory_space<vmem>>, vector<8x2xf32>
    tpu.vector_store %arg5[%c0_29, %c0_30], %95 {strides = array<i32>} : memref<8x2xf32, #tpu.memory_space<vmem>>, vector<8x2xf32>,
    return
  }
  func.func @transform_0(%arg0: i32) -> (i32, i32) {
    %c0_i32 = arith.constant 0 : i32
    %c0_i32_0 = arith.constant 0 : i32
    return %arg0, %c0_i32 : i32, i32
  }
  func.func @transform_1(%arg0: i32) -> (i32, i32) {
    %c0_i32 = arith.constant 0 : i32
    %c0_i32_0 = arith.constant 0 : i32
    %c0_i32_1 = arith.constant 0 : i32
    return %c0_i32, %c0_i32_0 : i32, i32
  }
  func.func @transform_2(%arg0: i32) -> (i32, i32) {
    %c0_i32 = arith.constant 0 : i32
    %c0_i32_0 = arith.constant 0 : i32
    %c0_i32_1 = arith.constant 0 : i32
    return %c0_i32, %c0_i32_0 : i32, i32
  }
  func.func @transform_3(%arg0: i32) -> (i32, i32) {
    %c0_i32 = arith.constant 0 : i32
    %c0_i32_0 = arith.constant 0 : i32
    %c0_i32_1 = arith.constant 0 : i32
    return %c0_i32, %c0_i32_0 : i32, i32
  }
  func.func @transform_4(%arg0: i32) -> (i32, i32) {
    %c0_i32 = arith.constant 0 : i32
    %c0_i32_0 = arith.constant 0 : i32
    return %arg0, %c0_i32 : i32, i32
  }
}

</mosaic_0001>

<llo_original>
// kernel: tpu_custom_call.1
$region0: #{tpu_custom_call.1}
  #allocation0 [shape = 'u32[]', space=smem, size = 0x4, offset = 0x4, fixed_abs, tag = 'smem constant byte address 0x4 - core index']
  #allocation1 [shape = 'u32[72,128]{1,0:T(1,128)}', space=vmem, size = 0x9000, scoped, tag = 'internal scratch']
  %s0 = inlined_call_operand.vmem [shape: f32[2,20], index: 0, kind: input, shape index: {}]
  %s1 = inlined_call_operand.vmem [shape: f32[16,32], index: 1, kind: input, shape index: {}]
  %s2 = inlined_call_operand.vmem [shape: f32[36,32], index: 2, kind: input, shape index: {}]
  %s3 = inlined_call_operand.vmem [shape: f32[8,32], index: 3, kind: input, shape index: {}]
  %s4 = inlined_call_operand.vmem [shape: f32[8,2], index: 4, kind: output, shape index: {}]
  %s5 = sld [smem:[#allocation0]]
  $region26: #{tpu_custom_call.1} parent=0
    _
  %s7 = ssub.s32 1, %s5
  %s8 = scalar_select 0, %s7, %s5
  // Predicated region
  $region2: #{tpu_custom_call.1} parent=0 // pred_check
    _
  $region3: #{tpu_custom_call.1} parent=0 // pred_check_branch
    %10 = sbr.rel (0) target = $region5
  $region4: #{tpu_custom_call.1} parent=0 // pred_region
    _
  $region5: #{tpu_custom_call.1} parent=0 // pred_fallthru
    _
  // Predicated region
  $region6: #{tpu_custom_call.1} parent=0 // pred_check
    _
  $region7: #{tpu_custom_call.1} parent=0 // pred_check_branch
    %12 = sbr.rel (0) target = $region9
  $region8: #{tpu_custom_call.1} parent=0 // pred_region
    _
  $region9: #{tpu_custom_call.1} parent=0 // pred_fallthru
    _
  // Predicated region
  $region10: #{tpu_custom_call.1} parent=0 // pred_check
    _
  $region11: #{tpu_custom_call.1} parent=0 // pred_check_branch
    %14 = sbr.rel (0) target = $region13
  $region12: #{tpu_custom_call.1} parent=0 // pred_region
    _
  $region13: #{tpu_custom_call.1} parent=0 // pred_fallthru
    _
  // Predicated region
  $region14: #{tpu_custom_call.1} parent=0 // pred_check
    _
  $region15: #{tpu_custom_call.1} parent=0 // pred_check_branch
    %16 = sbr.rel (0) target = $region17
  $region16: #{tpu_custom_call.1} parent=0 // pred_region
    _
  $region17: #{tpu_custom_call.1} parent=0 // pred_fallthru
    _
  %v17 = vld [vmem:[%s0] sm:$0x3]
  %v18 = vld [vmem:[%s3] sm:$0x1]
  %v19 = vld [vmem:[%s3 + $0x1] sm:$0x1]
  %v20 = vld [vmem:[%s3 + $0x2] sm:$0x1]
  %v21 = vld [vmem:[%s3 + $0x3] sm:$0x1]
  %v22 = vld [vmem:[%s3 + $0x4] sm:$0x1]
  %v23 = vld [vmem:[%s3 + $0x5] sm:$0x1]
  %v24 = vld [vmem:[%s3 + $0x6] sm:$0x1]
  %v25 = vld [vmem:[%s3 + $0x7] sm:$0x1]
  %v26 = vld [vmem:[%s1] sm:$0xff]
  %v27 = vld [vmem:[%s1 + $0x8] sm:$0xff]
  %v28 = vperm.slane %v18, 0
  %vm29 = vcmask 130048
  %v31 = vsel %vm29, %v17, 0
  %33 = vmatpush.msra.mxu0 0.0
  %34 = vmatpush.msra.mxu0 0.0
  %35 = vmatpush.msra.mxu0 0.0
  %36 = vmatpush.msra.mxu0 0.0
  %37 = vmatpush.msra.mxu0 0.0
  %38 = vmatpush.msra.mxu0 0.0
  %39 = vmatpush.msra.mxu0 0.0
  %40 = vmatpush.msra.mxu0 0.0
  %41 = vmatpush.msra.mxu0 0.0
  %42 = vmatpush.msra.mxu0 0.0
  %43 = vmatpush.msra.mxu0 0.0
  %44 = vmatpush.msra.mxu0 0.0
  %45 = vmatpush.msra.mxu0 0.0
  %46 = vmatpush.msra.mxu0 0.0
  %47 = vmatpush.msra.mxu0 %v27
  %48 = vmatpush.msra.mxu0 %v26
  %49 = vmatmul.f32.gmra.mxu0 %v31
  %v50 = vpop.f32.mrf.mxu0
  %v51 = vadd.f32 %v28, %v50
  %52 = vdwg.mxu0
  %vm53 = vcmask 254976
  %v54 = vsel %vm53, %v51, 0.0
  %55 = vadd.xlane.f32.xlu0 %v54
  %v56 = vpop.xlane.xlu0 %55
  %v57 = vrcp.pop 32.0
  %v58 = vmul.f32 32.0, %v57
  %v59 = vsub.f32 1.0, %v58
  %v60 = vmul.f32 %v57, %v59
  %v61 = vadd.f32 %v57, %v60
  %vm62 = vweird.f32 %v57
  %v63 = vsel %vm62, %v57, %v61
  %v64 = vmul.f32 %v56, %v63
  %v65 = vsub.f32 %v51, %v64
  %v66 = vmul.f32 %v65, %v65
  %v67 = vsel %vm53, %v66, 0.0
  %68 = vadd.xlane.f32.xlu0 %v67
  %v69 = vpop.xlane.xlu0 %68
  %v70 = vmul.f32 %v69, %v63
  %v71 = vadd.f32 %v70, 1e-05
  %v72 = vrsqrt.pop %v71
  %v73 = vmul.f32 %v72, %v71
  %v74 = vmul.f32 %v73, %v72
  %v75 = vmul.f32 0.5, %v74
  %v76 = vsub.f32 1.5, %v75
  %v77 = vmul.f32 %v72, %v76
  %vm78 = vweird.f32 %v71
  %vm79 = vweird.f32 %v72
  %vm80 = vmor %vm78, %vm79
  %v81 = vsel %vm80, %v72, %v77
  %v82 = vmul.f32 %v65, %v81
  %v83 = vperm.slane %v19, 0
  %v84 = vmul.f32 %v82, %v83
  %v85 = vperm.slane %v20, 0
  %v86 = vadd.f32 %v84, %v85
  %v87 = vmax.f32 %v86, 0.0
  %v88 = vld [vmem:[%s2] sm:$0xff]
  %v89 = vld [vmem:[%s2 + $0x8] sm:$0xff]
  %v90 = vld [vmem:[%s2 + $0x10] sm:$0xff]
  %v91 = vld [vmem:[%s2 + $0x18] sm:$0xff]
  %v92 = vperm.slane %v21, 0
  %vm93 = vcmask 261120
  %v95 = vsel %vm93, %v87, 0
  %97 = vmatpush.msra.mxu0 0.0
  %98 = vmatpush.msra.mxu0 0.0
  %99 = vmatpush.msra.mxu0 0.0
  %100 = vmatpush.msra.mxu0 0.0
  %101 = vmatpush.msra.mxu0 0.0
  %102 = vmatpush.msra.mxu0 0.0
  %103 = vmatpush.msra.mxu0 0.0
  %104 = vmatpush.msra.mxu0 0.0
  %105 = vmatpush.msra.mxu0 0.0
  %106 = vmatpush.msra.mxu0 0.0
  %107 = vmatpush.msra.mxu0 0.0
  %108 = vmatpush.msra.mxu0 0.0
  %109 = vmatpush.msra.mxu0 %v91
  %110 = vmatpush.msra.mxu0 %v90
  %111 = vmatpush.msra.mxu0 %v89
  %112 = vmatpush.msra.mxu0 %v88
  %113 = vmatmul.f32.gmra.mxu0 %v95
  %v114 = vpop.f32.mrf.mxu0
  %v115 = vadd.f32 %v92, %v114
  %116 = vdwg.mxu0
  %v117 = vld [vmem:[%s2 + $0x20] sm:$0xf]
  %118 = vset.pattern.permute.xlu0 16
  %119 = vperm.xlu0 %118, %v17
  %v120 = vpop.permute.xlu0 %119
  %v122 = vperm.slane %v117, 0
  %v123 = vmul.f32 %v120, %v122
  %v124 = vadd.f32 %v115, %v123
  %125 = vset.pattern.permute.xlu0 17
  %126 = vperm.xlu0 %125, %v17
  %v127 = vpop.permute.xlu0 %126
  %v129 = vperm.slane %v117, 1
  %v130 = vmul.f32 %v127, %v129
  %v131 = vadd.f32 %v124, %v130
  %132 = vset.pattern.permute.xlu0 18
  %133 = vperm.xlu0 %132, %v17
  %v134 = vpop.permute.xlu0 %133
  %v136 = vperm.slane %v117, 2
  %v137 = vmul.f32 %v134, %v136
  %v138 = vadd.f32 %v131, %v137
  %139 = vset.pattern.permute.xlu0 19
  %140 = vperm.xlu0 %139, %v17
  %v141 = vpop.permute.xlu0 %140
  %v143 = vperm.slane %v117, 3
  %v144 = vmul.f32 %v141, %v143
  %v145 = vadd.f32 %v138, %v144
  %v146 = vsel %vm53, %v145, 0.0
  %147 = vadd.xlane.f32.xlu0 %v146
  %v148 = vpop.xlane.xlu0 %147
  %v149 = vmul.f32 %v148, %v63
  %v150 = vsub.f32 %v145, %v149
  %v151 = vmul.f32 %v150, %v150
  %v152 = vsel %vm53, %v151, 0.0
  %153 = vadd.xlane.f32.xlu0 %v152
  %v154 = vpop.xlane.xlu0 %153
  %v155 = vmul.f32 %v154, %v63
  %v156 = vadd.f32 %v155, 1e-05
  %v157 = vrsqrt.pop %v156
  %v158 = vmul.f32 %v157, %v156
  %v159 = vmul.f32 %v158, %v157
  %v160 = vmul.f32 0.5, %v159
  %v161 = vsub.f32 1.5, %v160
  %v162 = vmul.f32 %v157, %v161
  %vm163 = vweird.f32 %v156
  %vm164 = vweird.f32 %v157
  %vm165 = vmor %vm163, %vm164
  %v166 = vsel %vm165, %v157, %v162
  %v167 = vmul.f32 %v150, %v166
  %v168 = vperm.slane %v22, 0
  %v169 = vmul.f32 %v167, %v168
  %v170 = vperm.slane %v23, 0
  %v171 = vadd.f32 %v169, %v170
  %v172 = vmax.f32 %v171, 0.0
  %v173 = vperm.slane %v24, 0
  %s175 = vtos %v25
  %v176 = vstv %s175
  %v179 = vsel %vm93, %v173, 0
  %v182 = vsel %vm93, %v172, 0
  %184 = vmatpush.xpose.msra.mxu0 0.0
  %185 = vmatpush.xpose.msra.mxu0 0.0
  %186 = vmatpush.xpose.msra.mxu0 0.0
  %187 = vmatpush.xpose.msra.mxu0 0.0
  %188 = vmatpush.xpose.msra.mxu0 0.0
  %189 = vmatpush.xpose.msra.mxu0 0.0
  %190 = vmatpush.xpose.msra.mxu0 0.0
  %191 = vmatpush.xpose.msra.mxu0 0.0
  %192 = vmatpush.xpose.msra.mxu0 0.0
  %193 = vmatpush.xpose.msra.mxu0 0.0
  %194 = vmatpush.xpose.msra.mxu0 0.0
  %195 = vmatpush.xpose.msra.mxu0 0.0
  %196 = vmatpush.xpose.msra.mxu0 0.0
  %197 = vmatpush.xpose.msra.mxu0 0.0
  %198 = vmatpush.xpose.msra.mxu0 0.0
  %199 = vmatpush.xpose.msra.mxu0 %v182
  %200 = vmatmul.f32.gmra.mxu0 %v179
  %v201 = vpop.f32.mrf.mxu0
  %v202 = vadd.f32 %v176, %v201
  %203 = vdwg.mxu0
  %vm204 = vcmask 15360
  %205 = vst.msk [vmem:[%s4] sm:$0xff] %vm204, %v202
  // Predicated region
  $region18: #{tpu_custom_call.1} parent=0 // pred_check
    _
  $region19: #{tpu_custom_call.1} parent=0 // pred_check_branch
    %207 = sbr.rel (0) target = $region21
  $region20: #{tpu_custom_call.1} parent=0 // pred_region
    _
  $region21: #{tpu_custom_call.1} parent=0 // pred_fallthru
    _
  // Predicated region
  $region22: #{tpu_custom_call.1} parent=0 // pred_check
    _
  $region23: #{tpu_custom_call.1} parent=0 // pred_check_branch
    %209 = sbr.rel (0) target = $region25
  $region24: #{tpu_custom_call.1} parent=0 // pred_region
    _
  $region25: #{tpu_custom_call.1} parent=0 // pred_fallthru
    _

</llo_original>
